<compile_context>
chip_gen: v6e
topology: v6e:2x2x1
jax: 0.10.0
libtpu: 0.0.40
codegen_flags: <defaults>
</compile_context>

<pallas_src>
import jax
import jax.numpy as jnp
from jax import lax
from jax.experimental import pallas as pl
from jax.experimental.pallas import tpu as pltpu


def make_rnn_chunk_kernel(t_chunk: int, b_pad: int):
    """Recurrence over one time-chunk; hidden state carried in the output block."""

    def kernel(pre_ref, whh_ref, h_ref):
        """
        pre_ref: (t_chunk*b_pad, H) bf16  projected inputs (embed@W_ih + bias), time-major
        whh_ref: (H, H)            bf16  hidden->hidden weights
        h_ref:   (b_pad, H)        f32   carried hidden state (constant block index
                                         across the grid -> stays resident in VMEM)
        """
        @pl.when(pl.program_id(0) == 0)
        def _():
            h_ref[...] = jnp.zeros_like(h_ref)

        whh = whh_ref[...]

        def step(t, h):
            row0 = pl.multiple_of(t * b_pad, b_pad)
            pre_t = pre_ref[pl.ds(row0, b_pad), :].astype(jnp.float32)
            # Serial critical path per step: MXU dot + VPU add + EUP tanh.
            return jnp.tanh(
                pre_t
                + jnp.dot(h.astype(jnp.bfloat16), whh,
                          preferred_element_type=jnp.float32)
            )

        # Bounded unroll keeps LLO scheduler visibility without code bloat at long S.
        unroll = t_chunk if t_chunk <= 8 else 8
        h = lax.fori_loop(0, t_chunk, step, h_ref[...], unroll=unroll)
        h_ref[...] = h

    return kernel


def rnn_forward(tweet, params, *, t_chunk=None):
    """tweet: (batch, seq) int32 token ids.  Returns (batch, output_size)."""
    embed_table = params["embed"]                       # (vocab, E) f32
    w_ih = params["w_ih"].astype(jnp.bfloat16)          # (E, H)
    w_hh = params["w_hh"].astype(jnp.bfloat16)          # (H, H)
    b = params["b"]                                     # (1, H) f32 == b_ih + b_hh
    w_fc = params["w_fc"]                               # (H, O) f32
    b_fc = params["b_fc"]                               # (1, O) f32

    B, S = tweet.shape
    H = w_hh.shape[0]

    # Fused projection table: deletes the input-projection matmul from the kernel
    # and lets the gather move (S,B,H) bf16 instead of (S,B,E) f32.
    proj = (
        jnp.dot(embed_table.astype(jnp.bfloat16), w_ih,
                preferred_element_type=jnp.float32) + b
    ).astype(jnp.bfloat16)                              # (vocab, H) bf16

    # Gather directly in time-major, projected space (XLA glue).
    pre_tm = proj[tweet.T]                              # (S, B, H) bf16

    # bf16 MXU LHS packs 16 rows per sublane group -> pad batch to 16.
    B_pad = ((B + 15) // 16) * 16
    if B_pad != B:
        pre_tm = jnp.pad(pre_tm, ((0, 0), (0, B_pad - B), (0, 0)))
    pre2d = pre_tm.reshape(S * B_pad, H)                # (S*B_pad, H) bf16

    # Time-chunk choice: ~512+ rows per chunk amortizes the ~0.35us/step grid
    # overhead; must divide S.  Caller may override (e.g. to exercise the pipeline).
    if t_chunk is None:
        target_rows = 512
        t_chunk = max(1, min(S, target_rows // B_pad))
    t_chunk = max(1, min(t_chunk, S))
    while S % t_chunk != 0:
        t_chunk -= 1
    n_chunks = S // t_chunk

    # Explicit VMEM budget (2x double-buffered pre chunk + weights + h), with
    # generous floor/cap so the same kernel is portable to v7x's 64 MiB VMEM.
    chunk_bytes = t_chunk * B_pad * H * 2
    needed = 2 * chunk_bytes + 2 * (H * H * 2) + 2 * (B_pad * H * 4)
    vmem_limit = int(min(32 * 1024 * 1024, max(16 * 1024 * 1024, 4 * needed)))

    h_final = pl.pallas_call(
        make_rnn_chunk_kernel(t_chunk, B_pad),
        out_shape=jax.ShapeDtypeStruct((B_pad, H), jnp.float32),
        grid=(n_chunks,),
        in_specs=[
            pl.BlockSpec((t_chunk * B_pad, H), lambda t: (t, 0)),  # pre chunk
            pl.BlockSpec((H, H), lambda t: (0, 0)),                # W_hh (resident)
        ],
        out_specs=pl.BlockSpec((B_pad, H), lambda t: (0, 0)),      # carried h
        compiler_params=pltpu.CompilerParams(
            dimension_semantics=("arbitrary",),
            vmem_limit_bytes=vmem_limit,
        ),
    )(pre2d, w_hh)

    h_final = h_final[:B]                               # drop batch padding

    # Tiny (H, O=4) FC: lane-sparse output, negligible compute — left to XLA.
    return h_final @ w_fc + b_fc


def init_params(key, vocab_size, embed_dim, hidden_size, output_size):
    ks = jax.random.split(key, 7)
    lim_rnn = 1.0 / jnp.sqrt(hidden_size)
    lim_fc = 1.0 / jnp.sqrt(hidden_size)
    embed = jax.random.normal(ks[0], (vocab_size, embed_dim), jnp.float32)
    w_ih = jax.random.uniform(ks[1], (embed_dim, hidden_size), jnp.float32, -lim_rnn, lim_rnn)
    w_hh = jax.random.uniform(ks[2], (hidden_size, hidden_size), jnp.float32, -lim_rnn, lim_rnn)
    b_ih = jax.random.uniform(ks[3], (hidden_size,), jnp.float32, -lim_rnn, lim_rnn)
    b_hh = jax.random.uniform(ks[4], (hidden_size,), jnp.float32, -lim_rnn, lim_rnn)
    w_fc = jax.random.uniform(ks[5], (hidden_size, output_size), jnp.float32, -lim_fc, lim_fc)
    b_fc = jax.random.uniform(ks[6], (output_size,), jnp.float32, -lim_fc, lim_fc)
    return {
        "embed": embed,
        "w_ih": w_ih,
        "w_hh": w_hh,
        "b": (b_ih + b_hh).reshape(1, hidden_size),
        "w_fc": w_fc,
        "b_fc": b_fc.reshape(1, output_size),
    }


def reference_forward(tweet, params):
    """Pure-JAX reference using the same projected-table / bf16-matmul recipe."""
    w_ih = params["w_ih"].astype(jnp.bfloat16)
    w_hh = params["w_hh"].astype(jnp.bfloat16)
    proj = (
        jnp.dot(params["embed"].astype(jnp.bfloat16), w_ih,
                preferred_element_type=jnp.float32) + params["b"]
    ).astype(jnp.bfloat16)
    pre = proj[tweet]                                   # (B, S, H) bf16
    B, S, H = pre.shape
    h = jnp.zeros((B, H), jnp.float32)
    for t in range(S):
        h = jnp.tanh(
            pre[:, t, :].astype(jnp.float32)
            + jnp.dot(h.astype(jnp.bfloat16), w_hh, preferred_element_type=jnp.float32)
        )
    return h @ params["w_fc"] + params["b_fc"]


if __name__ == "__main__":
    vocab_size, embed_dim, hidden_size, output_size = 100, 32, 32, 4
    batch, seq = 2, 8

    key = jax.random.PRNGKey(0)
    k_param, k_data = jax.random.split(key)
    params = init_params(k_param, vocab_size, embed_dim, hidden_size, output_size)
    tweet = jax.random.randint(k_data, (batch, seq), 0, vocab_size, dtype=jnp.int32)

    ref = reference_forward(tweet, params)

    # Multi-chunk path (grid=4): exercises the carried-h / double-buffered pipeline.
    out_chunked = jax.block_until_ready(rnn_forward(tweet, params, t_chunk=2))
    # Default heuristic path (single chunk at this toy size).
    out_default = jax.block_until_ready(rnn_forward(tweet, params))

    assert out_chunked.shape == (batch, output_size)
    assert out_default.shape == (batch, output_size)
    assert jnp.allclose(out_chunked, ref, atol=1e-3, rtol=1e-3), "chunked mismatch vs reference"
    assert jnp.allclose(out_default, ref, atol=1e-3, rtol=1e-3), "default mismatch vs reference"

    print("KERNEL_OK")
</pallas_src>

<mosaic_0001>
module attributes {stable_mosaic.version = 11 : i64} {
  func.func @kernel(%arg0: i32, %arg1: memref<32x32xbf16, #tpu.memory_space<vmem>>, %arg2: memref<32x32xbf16, #tpu.memory_space<vmem>>, %arg3: memref<16x32xf32, #tpu.memory_space<vmem>>) attributes {dimension_semantics = [#tpu.dimension_semantics<arbitrary>], iteration_bounds = array<i64: 4>, scalar_prefetch = 0 : i64, scratch_operands = 0 : i64, tpu.core_type = #tpu.core_type<tc>, window_params = [{transform_indices = @transform_0, window_bounds = array<i64: 32, 32>}, {pipeline_mode = #tpu.pipeline_mode<synchronous>, transform_indices = @transform_1, window_bounds = array<i64: 32, 32>}, {pipeline_mode = #tpu.pipeline_mode<synchronous>, transform_indices = @transform_2, window_bounds = array<i64: 16, 32>}]} {
    %c0_i32 = arith.constant 0 : i32
    %0 = arith.cmpi eq, %arg0, %c0_i32 : i32
    %1 = arith.extui %0 : i1 to i32
    %c0_i32_0 = arith.constant 0 : i32
    %2 = arith.cmpi ne, %1, %c0_i32_0 : i32
    scf.if %2 {
      %cst_11 = arith.constant 0.000000e+00 : f32
      %24 = vector.broadcast %cst_11 : f32 to vector<16x32xf32>
      %c0_12 = arith.constant 0 : index
      %c0_13 = arith.constant 0 : index
      %25 = vector.load %arg3[%c0_12, %c0_13] : memref<16x32xf32, #tpu.memory_space<vmem>>, vector<16x32xf32>
      tpu.vector_store %arg3[%c0_12, %c0_13], %24 {strides = array<i32>} : memref<16x32xf32, #tpu.memory_space<vmem>>, vector<16x32xf32>,
    } else {
    }
    %c0 = arith.constant 0 : index
    %c0_1 = arith.constant 0 : index
    %3 = vector.load %arg2[%c0, %c0_1] : memref<32x32xbf16, #tpu.memory_space<vmem>>, vector<32x32xbf16>
    %c0_2 = arith.constant 0 : index
    %c0_3 = arith.constant 0 : index
    %4 = vector.load %arg3[%c0_2, %c0_3] : memref<16x32xf32, #tpu.memory_space<vmem>>, vector<16x32xf32>
    %c0_i32_4 = arith.constant 0 : i32
    %c16_i32 = arith.constant 16 : i32
    %5 = arith.muli %c0_i32_4, %c16_i32 : i32
    %6 = tpu.assume_multiple %5, 16 : i32
    %7 = arith.index_cast %6 : i32 to index
    %c0_5 = arith.constant 0 : index
    %8 = vector.load %arg1[%7, %c0_5] : memref<32x32xbf16, #tpu.memory_space<vmem>>, vector<16x32xbf16>
    %9 = arith.extf %8 : vector<16x32xbf16> to vector<16x32xf32>
    %10 = arith.truncf %4 : vector<16x32xf32> to vector<16x32xbf16>
    %cst = arith.constant dense<0.000000e+00> : vector<16x32xf32>
    %11 = tpu.matmul %10, %3, %cst {dimension_numbers = #tpu.dot_dimension_numbers<[1], [0], [0], [1], [0, 0, 1, 1], [], []>} : vector<16x32xbf16>, vector<32x32xbf16>, vector<16x32xf32> -> vector<16x32xf32>
    %12 = arith.addf %9, %11 : vector<16x32xf32>
    %13 = math.tanh %12 : vector<16x32xf32>
    %c1_i32 = arith.constant 1 : i32
    %c16_i32_6 = arith.constant 16 : i32
    %14 = arith.muli %c1_i32, %c16_i32_6 : i32
    %15 = tpu.assume_multiple %14, 16 : i32
    %16 = arith.index_cast %15 : i32 to index
    %c0_7 = arith.constant 0 : index
    %17 = vector.load %arg1[%16, %c0_7] : memref<32x32xbf16, #tpu.memory_space<vmem>>, vector<16x32xbf16>
    %18 = arith.extf %17 : vector<16x32xbf16> to vector<16x32xf32>
    %19 = arith.truncf %13 : vector<16x32xf32> to vector<16x32xbf16>
    %cst_8 = arith.constant dense<0.000000e+00> : vector<16x32xf32>
    %20 = tpu.matmul %19, %3, %cst_8 {dimension_numbers = #tpu.dot_dimension_numbers<[1], [0], [0], [1], [0, 0, 1, 1], [], []>} : vector<16x32xbf16>, vector<32x32xbf16>, vector<16x32xf32> -> vector<16x32xf32>
    %21 = arith.addf %18, %20 : vector<16x32xf32>
    %22 = math.tanh %21 : vector<16x32xf32>
    %c2_i32 = arith.constant 2 : i32
    %c0_9 = arith.constant 0 : index
    %c0_10 = arith.constant 0 : index
    %23 = vector.load %arg3[%c0_9, %c0_10] : memref<16x32xf32, #tpu.memory_space<vmem>>, vector<16x32xf32>
    tpu.vector_store %arg3[%c0_9, %c0_10], %22 {strides = array<i32>} : memref<16x32xf32, #tpu.memory_space<vmem>>, vector<16x32xf32>,
    return
  }
  func.func @transform_0(%arg0: i32) -> (i32, i32) {
    %c0_i32 = arith.constant 0 : i32
    %c0_i32_0 = arith.constant 0 : i32
    return %arg0, %c0_i32 : i32, i32
  }
  func.func @transform_1(%arg0: i32) -> (i32, i32) {
    %c0_i32 = arith.constant 0 : i32
    %c0_i32_0 = arith.constant 0 : i32
    %c0_i32_1 = arith.constant 0 : i32
    return %c0_i32, %c0_i32_0 : i32, i32
  }
  func.func @transform_2(%arg0: i32) -> (i32, i32) {
    %c0_i32 = arith.constant 0 : i32
    %c0_i32_0 = arith.constant 0 : i32
    %c0_i32_1 = arith.constant 0 : i32
    return %c0_i32, %c0_i32_0 : i32, i32
  }
}

</mosaic_0001>

<llo_original>
// kernel: tpu_custom_call.1
$region0: #{tpu_custom_call.1}
  #allocation0 [shape = 'u32[]', space=smem, size = 0x4, offset = 0x4, fixed_abs, tag = 'smem constant byte address 0x4 - core index']
  #allocation1 [shape = 'u32[144,128]{1,0:T(1,128)}', space=vmem, size = 0x12000, scoped, tag = 'internal scratch']
  %s0 = inlined_call_operand.vmem [shape: bf16[128,32], index: 0, kind: input, shape index: {}]
  %s1 = inlined_call_operand.vmem [shape: bf16[32,32], index: 1, kind: input, shape index: {}]
  %s2 = inlined_call_operand.hbm [shape: f32[16,32], index: 2, kind: output, shape index: {}]
  %s3 = sld [smem:[#allocation0]]
  $region45: #{tpu_custom_call.1} parent=0
    _
  %s5 = ssub.s32 1, %s3
  %s6 = scalar_select 0, %s5, %s3
  $region1: #{tpu_custom_call.1} parent=0
    #allocation2 [shape = 'u8[8192]{0}', space=vmem, size = 0x2000, scoped, tag = 'output window, operand 0, single buffered']
    #allocation3 [shape = 's32[2]{0}', space=sflag, size = 0x8, scoped, tag = 'scoped memory for tpu_custom_call.1']
    %7 = vsyncpa [#allocation3], 0
    loop: start=0, step=1, limit=6
    $region2: #{tpu_custom_call.1} parent=1 // loop_pre_header
      _
    $region3: #{tpu_custom_call.1} parent=1 // loop_header
      %s9 = sphi 0, %s13
      %p10 = scmp.ge.s32.totalorder %s9, 6
      %s19 = sphi 0, %s21
      %s22 = sphi 0, %s19
      %s23 = sphi 0, %s22
      %s39 = sphi 0, %s23
      %s43 = sphi 0, %s43
      %s45 = sphi 0, %s43
      %s46 = sphi 0, %s45
      %s60 = sphi 0, %s46
      %s64 = sphi 0, %s64
      %s66 = sphi 0, %s64
      %s67 = sphi 0, %s66
      %s81 = sphi 0, %s67
    $region4: #{tpu_custom_call.1} parent=1 // loop_header_branch
      %12 = sbr.rel (%p10) target = $region8
    $region5: #{tpu_custom_call.1} parent=1 // loop_body
      %s14 = ssub.s32 %s9, 1
      %s15 = ssub.s32 %s9, 2
      %s16 = sadd.s32 %s9, 1
      %s17 = ssub.s32 %s9, %s16
      %p18 = scmp.eq.s32.totalorder %s17, 0
      %s20 = sadd.s32 %s19, 1
      %s21 = scalar_select %p18, %s19, %s20
      %p24 = pneg %p18
      %p25 = scmp.eq.s32.totalorder %s9, 3
      %p26 = por %p24, %p25
      %p27 = scmp.ne.s32.totalorder %s19, %s22
      %p28 = scmp.eq.s32.totalorder %s9, 0
      %p29 = por %p27, %p28
      %p30 = scmp.ne.s32.totalorder %s19, %s22
      %p31 = scmp.eq.s32.totalorder %s14, 3
      %p32 = por %p30, %p31
      %p33 = scmp.ne.s32.totalorder %s22, %s23
      %p34 = scmp.eq.s32.totalorder %s14, 0
      %p35 = por %p33, %p34
      %p36 = scmp.ne.s32.totalorder %s22, %s23
      %p37 = scmp.eq.s32.totalorder %s15, 3
      %p38 = por %p36, %p37
      %p40 = scmp.ne.s32.totalorder %s23, %s39
      %p41 = scmp.eq.s32.totalorder %s15, 0
      %p42 = por %p40, %p41
      %s44 = sadd.s32 %s43, 1
      %p47 = scmp.eq.s32.totalorder %s9, 3
      %p48 = scmp.ne.s32.totalorder %s43, %s45
      %p49 = scmp.eq.s32.totalorder %s9, 0
      %p50 = por %p48, %p49
      %p51 = scmp.ne.s32.totalorder %s43, %s45
      %p52 = scmp.eq.s32.totalorder %s14, 3
      %p53 = por %p51, %p52
      %p54 = scmp.ne.s32.totalorder %s45, %s46
      %p55 = scmp.eq.s32.totalorder %s14, 0
      %p56 = por %p54, %p55
      %p57 = scmp.ne.s32.totalorder %s45, %s46
      %p58 = scmp.eq.s32.totalorder %s15, 3
      %p59 = por %p57, %p58
      %p61 = scmp.ne.s32.totalorder %s46, %s60
      %p62 = scmp.eq.s32.totalorder %s15, 0
      %p63 = por %p61, %p62
      %s65 = sadd.s32 %s64, 1
      %p68 = scmp.eq.s32.totalorder %s9, 3
      %p69 = scmp.ne.s32.totalorder %s64, %s66
      %p70 = scmp.eq.s32.totalorder %s9, 0
      %p71 = por %p69, %p70
      %p72 = scmp.ne.s32.totalorder %s64, %s66
      %p73 = scmp.eq.s32.totalorder %s14, 3
      %p74 = por %p72, %p73
      %p75 = scmp.ne.s32.totalorder %s66, %s67
      %p76 = scmp.eq.s32.totalorder %s14, 0
      %p77 = por %p75, %p76
      %p78 = scmp.ne.s32.totalorder %s66, %s67
      %p79 = scmp.eq.s32.totalorder %s15, 3
      %p80 = por %p78, %p79
      %p82 = scmp.ne.s32.totalorder %s67, %s81
      %p83 = scmp.eq.s32.totalorder %s15, 0
      %p84 = por %p82, %p83
      %p85 = scmp.le.s32.totalorder 1, %s9
      %p86 = scmp.lt.s32.totalorder %s9, 5
      %p87 = pnand %p85, %p86
      %p88 = pneg %p87
      // Predicated region
      $region9: #{tpu_custom_call.1} parent=5 // pred_check
        _
      $region10: #{tpu_custom_call.1} parent=5 // pred_check_branch
        %90 = sbr.rel (%p87) target = $region12
      $region11: #{tpu_custom_call.1} parent=5 // pred_region
        %s91 = ssub.s32 %s9, 1
        // Predicated region
        $region13: #{tpu_custom_call.1} parent=11 // pred_check
          %p92 = pneg %p56
        $region14: #{tpu_custom_call.1} parent=11 // pred_check_branch
          %94 = sbr.rel (%p92) target = $region16
        $region15: #{tpu_custom_call.1} parent=11 // pred_region
          _
        $region16: #{tpu_custom_call.1} parent=11 // pred_fallthru
          _
      $region12: #{tpu_custom_call.1} parent=5 // pred_fallthru
        _
      %p95 = scmp.lt.s32.totalorder %s9, 4
      // Predicated region
      $region17: #{tpu_custom_call.1} parent=5 // pred_check
        %p96 = pneg %p95
      $region18: #{tpu_custom_call.1} parent=5 // pred_check_branch
        %98 = sbr.rel (%p96) target = $region20
      $region19: #{tpu_custom_call.1} parent=5 // pred_region
        // Predicated region
        $region21: #{tpu_custom_call.1} parent=19 // pred_check
          %p99 = pneg %p29
        $region22: #{tpu_custom_call.1} parent=19 // pred_check_branch
          %101 = sbr.rel (%p99) target = $region24
        $region23: #{tpu_custom_call.1} parent=19 // pred_region
          %s102 = smul.u32 4, %s9
          %p103 = scmp.lt.s32.totalorder %s102, 15
          %s104 = scalar_select %p103, %s102, 15
          %s105 = smul.addr %s104, 4
          %s106 = scalar_lea.vmem %s0, %s105
          %s107 = smul.u32 4, %s9
        $region24: #{tpu_custom_call.1} parent=19 // pred_fallthru
          _
      $region20: #{tpu_custom_call.1} parent=5 // pred_fallthru
        _
      %p108 = scmp.le.s32.totalorder 1, %s9
      %p109 = scmp.lt.s32.totalorder %s9, 5
      %p110 = pnand %p108, %p109
      %p111 = pneg %p110
      // Predicated region
      $region25: #{tpu_custom_call.1} parent=5 // pred_check
        _
      $region26: #{tpu_custom_call.1} parent=5 // pred_check_branch
        %113 = sbr.rel (%p110) target = $region28
      $region27: #{tpu_custom_call.1} parent=5 // pred_region
        %s114 = ssub.s32 %s9, 1
        %s115 = smul.u32 4, %s14
        %p116 = scmp.lt.s32.totalorder %s115, 15
        %s117 = scalar_select %p116, %s115, 15
        %s118 = smul.addr %s117, 4
        %s119 = scalar_lea.vmem %s0, %s118
        %p120 = pneg %p35
        %p121 = pneg %p32
        %p122 = pneg %p56
        %p123 = pneg %p53
        %p124 = pneg %p77
        %p125 = pneg %p74
        %s126 = smul.u32 4, %s14
        %p127 = scmp.lt.s32.totalorder %s126, 15
        %s128 = scalar_select %p127, %s126, 15
        %s129 = smul.addr %s128, 4
        %s130 = scalar_lea.vmem %s0, %s129
        %s131 = smul.u32 4, %s14
        %p133 = scmp.eq.s32.totalorder %s14, 0
        // Predicated region
        $region29: #{tpu_custom_call.1} parent=27 // pred_check
          %p134 = pneg %p133
        $region30: #{tpu_custom_call.1} parent=27 // pred_check_branch
          %136 = sbr.rel (%p134) target = $region32
        $region31: #{tpu_custom_call.1} parent=27 // pred_region
          %vm137 = vcmask 261120
          %138 = vst.msk [vmem:[#allocation2] sm:$0xff] %vm137, 0.0
          %139 = vst.msk [vmem:[#allocation2 + $0x8] sm:$0xff] %vm137, 0.0
        $region32: #{tpu_custom_call.1} parent=27 // pred_fallthru
          _
        %v140 = vld [vmem:[%s1] sm:$0xf]
        %v141 = vld [vmem:[%s1 + $0x4] sm:$0xf]
        %v142 = vld [vmem:[%s1 + $0x8] sm:$0xf]
        %v143 = vld [vmem:[%s1 + $0xc] sm:$0xf]
        %v144 = vld [vmem:[#allocation2] sm:$0xff]
        %v145 = vld [vmem:[#allocation2 + $0x8] sm:$0xff]
        %v146 = vld [vmem:[%s130] sm:$0xf]
        %v147 = vld [vmem:[%s130 + $0x4] sm:$0xf]
        %v148 = vunpack.c.l.bf16 %v146
        %v149 = vunpack.c.l.bf16 %v147
        %v150 = vpack.c.bf16 %v145, %v144
        %v155 = vunpack.c.l.b16 %v140
        %v156 = vunpack.c.l.b16 %v141
        %v157 = vunpack.c.l.b16 %v142
        %v158 = vunpack.c.l.b16 %v143
        %v159 = vpack.c.b16 %v156, %v155
        %v160 = vpack.c.b16 %v158, %v157
        %vm163 = vcmask 261120
        %v165 = vsel %vm163, %v150, 0
        %167 = vmatprep.subr.bf16.mxu0 0
        %168 = vmatpush1.bf16.msra.mxu0 0
        %169 = vmatprep.subr.bf16.mxu0 0
        %170 = vmatpush1.bf16.msra.mxu0 0
        %171 = vmatprep.subr.bf16.mxu0 0
        %172 = vmatpush1.bf16.msra.mxu0 0
        %173 = vmatprep.subr.bf16.mxu0 0
        %174 = vmatpush1.bf16.msra.mxu0 0
        %175 = vmatprep.subr.bf16.mxu0 0
        %176 = vmatpush1.bf16.msra.mxu0 0
        %177 = vmatprep.subr.bf16.mxu0 0
        %178 = vmatpush1.bf16.msra.mxu0 0
        %179 = vmatprep.subr.bf16.mxu0 0
        %180 = vmatpush1.bf16.msra.mxu0 %v160
        %181 = vmatprep.subr.bf16.mxu0 0
        %182 = vmatpush1.bf16.msra.mxu0 %v159
        %183 = vmatprep.subr.bf16.mxu0 0
        %184 = vmatpush2.bf16.msra.mxu0 0
        %185 = vmatprep.subr.bf16.mxu0 0
        %186 = vmatpush2.bf16.msra.mxu0 0
        %187 = vmatprep.subr.bf16.mxu0 0
        %188 = vmatpush2.bf16.msra.mxu0 0
        %189 = vmatprep.subr.bf16.mxu0 0
        %190 = vmatpush2.bf16.msra.mxu0 0
        %191 = vmatprep.subr.bf16.mxu0 0
        %192 = vmatpush2.bf16.msra.mxu0 0
        %193 = vmatprep.subr.bf16.mxu0 0
        %194 = vmatpush2.bf16.msra.mxu0 0
        %195 = vmatprep.subr.bf16.mxu0 0
        %196 = vmatpush2.bf16.msra.mxu0 0
        %197 = vmatprep.subr.bf16.mxu0 0
        %198 = vmatpush2.bf16.msra.mxu0 0
        %199 = vmatprep.mubr.bf16.mxu0 0
        %200 = vmatmul.mubr.bf16.gmra.mxu0 %v165
        %v201 = vpop.f32.mrf.mxu0
        %v202 = vadd.f32 0.0, %v201
        %v203 = vpop.f32.mrf.mxu0
        %v204 = vpop.f32.mrf.mxu0
        %v205 = vadd.f32 0.0, %v204
        %v206 = vpop.f32.mrf.mxu0
        %207 = vdwg.mxu0
        %v208 = vadd.f32 %v148, %v202
        %v209 = vadd.f32 %v149, %v205
        %v210 = vtanh.pop %v208
        %v211 = vtanh.pop %v209
        %s212 = scalar_lea.vmem %s130, 8
        %v213 = vld [vmem:[%s212] sm:$0xf]
        %v214 = vld [vmem:[%s212 + $0x4] sm:$0xf]
        %v215 = vunpack.c.l.bf16 %v213
        %v216 = vunpack.c.l.bf16 %v214
        %v217 = vpack.c.bf16 %v211, %v210
        %v219 = vsel %vm163, %v217, 0
        %221 = vmatprep.subr.bf16.mxu0 0
        %222 = vmatpush1.bf16.msra.mxu0 0
        %223 = vmatprep.subr.bf16.mxu0 0
        %224 = vmatpush1.bf16.msra.mxu0 0
        %225 = vmatprep.subr.bf16.mxu0 0
        %226 = vmatpush1.bf16.msra.mxu0 0
        %227 = vmatprep.subr.bf16.mxu0 0
        %228 = vmatpush1.bf16.msra.mxu0 0
        %229 = vmatprep.subr.bf16.mxu0 0
        %230 = vmatpush1.bf16.msra.mxu0 0
        %231 = vmatprep.subr.bf16.mxu0 0
        %232 = vmatpush1.bf16.msra.mxu0 0
        %233 = vmatprep.subr.bf16.mxu0 0
        %234 = vmatpush1.bf16.msra.mxu0 %v160
        %235 = vmatprep.subr.bf16.mxu0 0
        %236 = vmatpush1.bf16.msra.mxu0 %v159
        %237 = vmatprep.subr.bf16.mxu0 0
        %238 = vmatpush2.bf16.msra.mxu0 0
        %239 = vmatprep.subr.bf16.mxu0 0
        %240 = vmatpush2.bf16.msra.mxu0 0
        %241 = vmatprep.subr.bf16.mxu0 0
        %242 = vmatpush2.bf16.msra.mxu0 0
        %243 = vmatprep.subr.bf16.mxu0 0
        %244 = vmatpush2.bf16.msra.mxu0 0
        %245 = vmatprep.subr.bf16.mxu0 0
        %246 = vmatpush2.bf16.msra.mxu0 0
        %247 = vmatprep.subr.bf16.mxu0 0
        %248 = vmatpush2.bf16.msra.mxu0 0
        %249 = vmatprep.subr.bf16.mxu0 0
        %250 = vmatpush2.bf16.msra.mxu0 0
        %251 = vmatprep.subr.bf16.mxu0 0
        %252 = vmatpush2.bf16.msra.mxu0 0
        %253 = vmatprep.mubr.bf16.mxu0 0
        %254 = vmatmul.mubr.bf16.gmra.mxu0 %v219
        %v255 = vpop.f32.mrf.mxu0
        %v256 = vadd.f32 0.0, %v255
        %v257 = vpop.f32.mrf.mxu0
        %v258 = vpop.f32.mrf.mxu0
        %v259 = vadd.f32 0.0, %v258
        %v260 = vpop.f32.mrf.mxu0
        %261 = vdwg.mxu0
        %v262 = vadd.f32 %v215, %v256
        %v263 = vadd.f32 %v216, %v259
        %v264 = vtanh.pop %v262
        %v265 = vtanh.pop %v263
        %266 = vst.msk [vmem:[#allocation2] sm:$0xff] %vm163, %v264
        %267 = vst.msk [vmem:[#allocation2 + $0x8] sm:$0xff] %vm163, %v265
        // Predicated region
        $region33: #{tpu_custom_call.1} parent=27 // pred_check
          %p268 = pneg %p74
        $region34: #{tpu_custom_call.1} parent=27 // pred_check_branch
          %270 = sbr.rel (%p268) target = $region36
        $region35: #{tpu_custom_call.1} parent=27 // pred_region
          %s272 = ssub.s32 256, 256
          %273 = vsyncadd [#allocation3], %s272
          %s274 = sshll.u32 [#allocation2], 4
          %s275 = int_to_ptr.vmem [resolvable:$true] %s274
          %280 = dma.vmem_to_hbm [thread:$0]  %s275, 256, %s2, [#allocation3], 128, 128, 8
        $region36: #{tpu_custom_call.1} parent=27 // pred_fallthru
          _
        // Predicated region
        $region37: #{tpu_custom_call.1} parent=27 // pred_check
          %p281 = pneg %p74
        $region38: #{tpu_custom_call.1} parent=27 // pred_check_branch
          %283 = sbr.rel (%p281) target = $region40
        $region39: #{tpu_custom_call.1} parent=27 // pred_region
          %284 = dma.done [#allocation3], 256
        $region40: #{tpu_custom_call.1} parent=27 // pred_fallthru
          _
      $region28: #{tpu_custom_call.1} parent=5 // pred_fallthru
        _
      %p285 = scmp.le.s32.totalorder 2, %s9
      // Predicated region
      $region41: #{tpu_custom_call.1} parent=5 // pred_check
        %p286 = pneg %p285
      $region42: #{tpu_custom_call.1} parent=5 // pred_check_branch
        %288 = sbr.rel (%p286) target = $region44
      $region43: #{tpu_custom_call.1} parent=5 // pred_region
        %s289 = ssub.s32 %s9, 2
      $region44: #{tpu_custom_call.1} parent=5 // pred_fallthru
        _
    $region6: #{tpu_custom_call.1} parent=1 // loop_footer
      %s13 = sadd.s32 1, %s9
    $region7: #{tpu_custom_call.1} parent=1 // loop_footer_branch
      %8 = sbr.rel target = $region3
    $region8: #{tpu_custom_call.1} parent=1 // loop_exit
      _
    %290 = vsyncpa [#allocation3], 1
    %s291 = scalar_lea.sflag [#allocation3], 1
    %292 = vsyncpa %s291, 1

</llo_original>
